<compile_context>
chip_gen: v7x
topology: tpu7x:2x2x1
jax: 0.10.0
libtpu: 0.0.40
codegen_flags: <defaults>
</compile_context>

<pallas_src>
import functools
import math

import jax
import jax.numpy as jnp
from jax import lax
from jax.experimental import pallas as pl
from jax.experimental.pallas import tpu as pltpu


def _vmem_limit_bytes():
    """~3/4 of physical VMEM, capped at 96 MiB (=> ~96 MiB v5e/v6e, ~48 MiB v7x)."""
    try:
        cap = int(pltpu.get_tpu_info().vmem_capacity_bytes)
        return int(min(cap * 3 // 4, 96 * 1024 * 1024))
    except Exception:
        return 48 * 1024 * 1024  # conservative fallback, safe on every current chip


_VMEM_LIMIT = _vmem_limit_bytes()

# MXU input dtype for the perf path (f32 accumulation, f32 softmax -> v5e-safe).
# Pass mxu_dtype=None to the wrapper for an all-f32 exact path.
_DEFAULT_MXU_DTYPE = jnp.bfloat16


def _pick_tile(dim, target, align):
    """Largest multiple of `align` that divides `dim` and is <= target; else full `dim`."""
    if dim <= target:
        return dim
    t = (target // align) * align
    while t >= align:
        if dim % t == 0:
            return t
        t -= align
    return dim


def _mm_tb(x, w, mxu_dtype):
    """x @ w^T with torch-layout (out, in) weight: trans-B contraction on the MXU."""
    dt = mxu_dtype if mxu_dtype is not None else x.dtype
    return lax.dot_general(x.astype(dt), w.astype(dt), (((1,), (1,)), ((), ())),
                           preferred_element_type=jnp.float32)


# ---------------------------------------------------------------------------
# Kernel 1: tiled linear  y = x @ W^T + b   (W in torch (out, in) layout)
#   grid = (M tiles, N tiles, K tiles); K is the reduction ("arbitrary").
# ---------------------------------------------------------------------------
def _linear_kernel(x_ref, w_ref, b_ref, o_ref, acc_ref, *, mxu_dtype):
    @pl.when(pl.program_id(2) == 0)
    def _init():
        acc_ref[...] = jnp.zeros_like(acc_ref)

    acc_ref[...] += _mm_tb(x_ref[...], w_ref[...], mxu_dtype)

    @pl.when(pl.program_id(2) == pl.num_programs(2) - 1)
    def _finalize():
        o_ref[...] = (acc_ref[...] + b_ref[...]).astype(o_ref.dtype)


def linear_pallas(x2d, w, b, *, out_dtype=None, mxu_dtype=_DEFAULT_MXU_DTYPE,
                  tm_target=256, tn_target=256, tk_target=1024):
    N, Din = x2d.shape
    Dout = w.shape[0]
    out_dtype = out_dtype or x2d.dtype
    tm = _pick_tile(N, tm_target, 16)        # 16: sublane-aligned bf16 output tiles
    tn = _pick_tile(Dout, tn_target, 128)
    tk = _pick_tile(Din, tk_target, 128)     # large tk -> fewer accumulator round trips
    grid = (N // tm, Dout // tn, Din // tk)

    flops = int(2 * N * Din * Dout)
    bytes_acc = int(N * Din * x2d.dtype.itemsize * grid[1]          # x re-read per N tile
                    + Dout * Din * w.dtype.itemsize * grid[0]       # w re-read per M tile
                    + Dout * b.dtype.itemsize * grid[0]
                    + N * Dout * jnp.dtype(out_dtype).itemsize)

    return pl.pallas_call(
        functools.partial(_linear_kernel, mxu_dtype=mxu_dtype),
        out_shape=jax.ShapeDtypeStruct((N, Dout), out_dtype),
        grid=grid,
        in_specs=[pl.BlockSpec((tm, tk), lambda i, j, k: (i, k)),
                  pl.BlockSpec((tn, tk), lambda i, j, k: (j, k)),   # torch (out,in): trans-B
                  pl.BlockSpec((1, tn), lambda i, j, k: (0, j))],
        out_specs=pl.BlockSpec((tm, tn), lambda i, j, k: (i, j)),
        scratch_shapes=[pltpu.VMEM((tm, tn), jnp.float32)],
        compiler_params=pltpu.CompilerParams(
            dimension_semantics=("parallel", "parallel", "arbitrary"),
            vmem_limit_bytes=_VMEM_LIMIT),
        cost_estimate=pl.CostEstimate(flops=flops, transcendentals=0,
                                      bytes_accessed=bytes_acc),
    )(x2d, w, b.reshape(1, Dout))


# ---------------------------------------------------------------------------
# Kernel 2: fused 3-stream Q/K/V projection (distinct q/k/v tensors, same row count).
# ---------------------------------------------------------------------------
def _qkv_proj_kernel(xq_ref, xk_ref, xv_ref, wq_ref, wk_ref, wv_ref,
                     bq_ref, bk_ref, bv_ref, oq_ref, ok_ref, ov_ref,
                     accq, acck, accv, *, mxu_dtype):
    @pl.when(pl.program_id(2) == 0)
    def _init():
        accq[...] = jnp.zeros_like(accq)
        acck[...] = jnp.zeros_like(acck)
        accv[...] = jnp.zeros_like(accv)

    accq[...] += _mm_tb(xq_ref[...], wq_ref[...], mxu_dtype)
    acck[...] += _mm_tb(xk_ref[...], wk_ref[...], mxu_dtype)
    accv[...] += _mm_tb(xv_ref[...], wv_ref[...], mxu_dtype)

    @pl.when(pl.program_id(2) == pl.num_programs(2) - 1)
    def _finalize():
        oq_ref[...] = (accq[...] + bq_ref[...]).astype(oq_ref.dtype)
        ok_ref[...] = (acck[...] + bk_ref[...]).astype(ok_ref.dtype)
        ov_ref[...] = (accv[...] + bv_ref[...]).astype(ov_ref.dtype)


def qkv_projection_pallas(xq, xk, xv, wq, wk, wv, bq, bk, bv, *,
                          out_dtype, mxu_dtype=_DEFAULT_MXU_DTYPE,
                          tm_target=256, tn_target=256, tk_target=512):
    # NOTE: tk kept at 512 here (3 input/weight/output streams + 3 f32 accumulators
    # must fit the v7x 64 MiB VMEM budget); the single-stream path uses tk up to 1024.
    N, Din = xq.shape
    Dout = wq.shape[0]
    tm = _pick_tile(N, tm_target, 16)
    tn = _pick_tile(Dout, tn_target, 128)
    tk = _pick_tile(Din, tk_target, 128)
    grid = (N // tm, Dout // tn, Din // tk)

    x_spec = pl.BlockSpec((tm, tk), lambda i, j, k: (i, k))
    w_spec = pl.BlockSpec((tn, tk), lambda i, j, k: (j, k))   # torch (out,in): trans-B
    b_spec = pl.BlockSpec((1, tn), lambda i, j, k: (0, j))
    o_spec = pl.BlockSpec((tm, tn), lambda i, j, k: (i, j))
    out_sds = jax.ShapeDtypeStruct((N, Dout), out_dtype)

    flops = int(3 * 2 * N * Din * Dout)
    bytes_acc = int(3 * (N * Din * xq.dtype.itemsize * grid[1]
                         + Dout * Din * wq.dtype.itemsize * grid[0]
                         + Dout * bq.dtype.itemsize * grid[0]
                         + N * Dout * jnp.dtype(out_dtype).itemsize))

    return pl.pallas_call(
        functools.partial(_qkv_proj_kernel, mxu_dtype=mxu_dtype),
        out_shape=(out_sds, out_sds, out_sds),
        grid=grid,
        in_specs=[x_spec, x_spec, x_spec, w_spec, w_spec, w_spec,
                  b_spec, b_spec, b_spec],
        out_specs=(o_spec, o_spec, o_spec),
        scratch_shapes=[pltpu.VMEM((tm, tn), jnp.float32)] * 3,
        compiler_params=pltpu.CompilerParams(
            dimension_semantics=("parallel", "parallel", "arbitrary"),
            vmem_limit_bytes=_VMEM_LIMIT),
        cost_estimate=pl.CostEstimate(flops=flops, transcendentals=0,
                                      bytes_accessed=bytes_acc),
    )(xq, xk, xv, wq, wk, wv,
      bq.reshape(1, Dout), bk.reshape(1, Dout), bv.reshape(1, Dout))


# ---------------------------------------------------------------------------
# Kernel 3: attention (all heads, all batch elements of a query tile) fused with the
# output projection.  Consumes the (S, B, D) layout directly -> no activation
# transposes; writes lane-dense (tq, B, D) output blocks already projected by W_o.
# ---------------------------------------------------------------------------
def _attn_outproj_kernel(q_ref, k_ref, v_ref, wo_ref, bo_ref, o_ref, *,
                         h, d_k, scale, mxu_dtype):
    # q_ref: (tq, B, D)  k_ref/v_ref: (S_kv, B, D)  wo_ref: (D, D) torch (out,in)  bo_ref: (1, D)
    B = q_ref.shape[1]
    q = q_ref[...]
    k = k_ref[...]
    v = v_ref[...]
    wo = wo_ref[...]
    bo = bo_ref[...]

    # Static loops over batch / heads; heads are lane slices so there is no
    # (B,S,h,d_k) <-> (B,h,S,d_k) relayout.
    # TODO(synk): for long S add a KV grid axis with online softmax (flash pattern) and
    # batch the per-head matmuls into one dot_general when h*d_k is large.
    ys = []
    for b in range(B):
        q_b = q[:, b, :]                  # (tq, D)
        k_b = k[:, b, :]                  # (S_kv, D)
        v_b = v[:, b, :]
        heads = []
        for head in range(h):
            lo = head * d_k
            q_h = q_b[:, lo:lo + d_k]
            k_h = k_b[:, lo:lo + d_k]
            v_h = v_b[:, lo:lo + d_k]
            # q_h @ k_h^T without materializing a transpose (contract last dims).
            s = lax.dot_general(q_h, k_h, (((1,), (1,)), ((), ())),
                                preferred_element_type=jnp.float32) * scale   # (tq, S_kv)
            m = jnp.max(s, axis=-1, keepdims=True)
            p = jnp.exp(s - m)                                  # f32 softmax math (v5e-safe)
            l = jnp.sum(p, axis=-1, keepdims=True)
            ctx = jnp.dot(p.astype(v_h.dtype), v_h,
                          preferred_element_type=jnp.float32)   # (tq, d_k), f32 accumulate
            heads.append(ctx / l)                               # exact normalization
        ctx_b = jnp.concatenate(heads, axis=-1)                 # (tq, D), lane-dense
        # Fused output projection: context never leaves VMEM.
        y_b = _mm_tb(ctx_b, wo, mxu_dtype)                      # (tq, D)
        ys.append(y_b + bo)
    o_ref[...] = jnp.stack(ys, axis=1).astype(o_ref.dtype)      # (tq, B, D) full-block store


def attention_outproj_pallas(q, k, v, wo, bo, *, h, out_dtype,
                             mxu_dtype=_DEFAULT_MXU_DTYPE, tq_target=256):
    Sq, B, D = q.shape
    Skv = k.shape[0]
    d_k = D // h
    scale = 1.0 / math.sqrt(d_k)
    tq = _pick_tile(Sq, tq_target, 8)
    grid = (Sq // tq,)

    flops = int(B * h * 4 * Sq * Skv * d_k + 2 * Sq * B * D * D)
    trans = int(B * h * Sq * Skv)
    bytes_acc = int(sum(a.size * a.dtype.itemsize for a in (q, k, v, wo))
                    + D * bo.dtype.itemsize
                    + Sq * B * D * jnp.dtype(out_dtype).itemsize)

    return pl.pallas_call(
        functools.partial(_attn_outproj_kernel, h=h, d_k=d_k, scale=scale,
                          mxu_dtype=mxu_dtype),
        out_shape=jax.ShapeDtypeStruct((Sq, B, D), out_dtype),
        grid=grid,
        in_specs=[pl.BlockSpec((tq, B, D), lambda i: (i, 0, 0)),
                  pl.BlockSpec((Skv, B, D), lambda i: (0, 0, 0)),   # resident across q tiles
                  pl.BlockSpec((Skv, B, D), lambda i: (0, 0, 0)),
                  pl.BlockSpec((D, D), lambda i: (0, 0)),           # W_o resident
                  pl.BlockSpec((1, D), lambda i: (0, 0))],
        out_specs=pl.BlockSpec((tq, B, D), lambda i: (i, 0, 0)),
        compiler_params=pltpu.CompilerParams(
            dimension_semantics=("parallel",),
            vmem_limit_bytes=_VMEM_LIMIT),
        cost_estimate=pl.CostEstimate(flops=flops, transcendentals=trans,
                                      bytes_accessed=bytes_acc),
    )(q, k, v, wo, bo.reshape(1, D))


# ---------------------------------------------------------------------------
# Wrapper reproducing MultiHeadsAttention.forward (mask=None, dropout=0)
# ---------------------------------------------------------------------------
def multi_heads_attention(query, key, value, params, *, h, batch_first=False,
                          mask=None, mxu_dtype=_DEFAULT_MXU_DTYPE):
    # TODO(synk): additive attention mask / dropout not implemented (module defaults).
    assert mask is None
    Ws, bs = params["W"], params["b"]       # torch (out, in) layout; never transposed here
    d_model = query.shape[-1]
    in_dtype = query.dtype
    compute_dtype = mxu_dtype if mxu_dtype is not None else in_dtype

    self_attn = (query is key) and (key is value)
    if batch_first:
        # One layout change into the attention-friendly (S, B, D) layout (undone at the end).
        query = jnp.transpose(query, (1, 0, 2))
        key = query if self_attn else jnp.transpose(key, (1, 0, 2))
        value = query if self_attn else jnp.transpose(value, (1, 0, 2))

    q_shape, k_shape, v_shape = query.shape, key.shape, value.shape
    xq = query.reshape(-1, d_model)
    xk = key.reshape(-1, d_model)
    xv = value.reshape(-1, d_model)

    if self_attn:
        # Self-attention fast path: one activation stream, one accumulator; weights
        # concatenated along the output dim (pre-concatenate at param setup in production).
        w_qkv = jnp.concatenate([Ws[0], Ws[1], Ws[2]], axis=0)   # (3*d_model, d_model)
        b_qkv = jnp.concatenate([bs[0], bs[1], bs[2]], axis=0)
        qkv = linear_pallas(xq, w_qkv, b_qkv, out_dtype=compute_dtype, mxu_dtype=mxu_dtype)
        q2 = qkv[:, :d_model]
        k2 = qkv[:, d_model:2 * d_model]
        v2 = qkv[:, 2 * d_model:]
    elif xq.shape[0] == xk.shape[0] == xv.shape[0]:
        q2, k2, v2 = qkv_projection_pallas(
            xq, xk, xv, Ws[0], Ws[1], Ws[2], bs[0], bs[1], bs[2],
            out_dtype=compute_dtype, mxu_dtype=mxu_dtype)
    else:
        # Cross-attention with different source/target lengths: independent projections.
        q2 = linear_pallas(xq, Ws[0], bs[0], out_dtype=compute_dtype, mxu_dtype=mxu_dtype)
        k2 = linear_pallas(xk, Ws[1], bs[1], out_dtype=compute_dtype, mxu_dtype=mxu_dtype)
        v2 = linear_pallas(xv, Ws[2], bs[2], out_dtype=compute_dtype, mxu_dtype=mxu_dtype)

    q3 = q2.reshape(q_shape)
    k3 = k2.reshape(k_shape)
    v3 = v2.reshape(v_shape)

    # Attention + fused output projection on the (S, B, D) layout directly.
    out = attention_outproj_pallas(q3, k3, v3, Ws[3], bs[3], h=h,
                                   out_dtype=in_dtype, mxu_dtype=mxu_dtype)

    if batch_first:
        out = jnp.transpose(out, (1, 0, 2))
    return out


# ---------------------------------------------------------------------------
# Pure-JAX reference (float32 matmul precision) mirroring the PyTorch module.
# ---------------------------------------------------------------------------
def ref_mha(query, key, value, params, *, h, batch_first=False):
    with jax.default_matmul_precision("float32"):
        Ws, bs = params["W"], params["b"]
        d_model = query.shape[-1]
        d_k = d_model // h

        def lin(x, W, b):
            return x @ W.T + b

        q = lin(query, Ws[0], bs[0])
        k = lin(key, Ws[1], bs[1])
        v = lin(value, Ws[2], bs[2])
        if not batch_first:
            q, k, v = [jnp.transpose(x, (1, 0, 2)) for x in (q, k, v)]
        B, S, _ = q.shape
        q, k, v = [jnp.transpose(x.reshape(B, S, h, d_k), (0, 2, 1, 3)) for x in (q, k, v)]
        scores = (q @ jnp.swapaxes(k, -1, -2)) / math.sqrt(d_k)
        p = jax.nn.softmax(scores, axis=-1)
        x = p @ v
        x = jnp.transpose(x, (0, 2, 1, 3)).reshape(B, S, h * d_k)
        if not batch_first:
            x = jnp.transpose(x, (1, 0, 2))
        return lin(x, Ws[3], bs[3])


if __name__ == "__main__":
    # Small shapes: seq=8, batch=2, h=4, d_model=32 (d_k=8), batch_first=False.
    S, B, H, D_MODEL = 8, 2, 4, 32

    root = jax.random.PRNGKey(0)
    keys = jax.random.split(root, 12)
    bound = 1.0 / math.sqrt(D_MODEL)
    Ws = [jax.random.uniform(keys[i], (D_MODEL, D_MODEL), jnp.float32, -bound, bound)
          for i in range(4)]
    bs = [jax.random.uniform(keys[4 + i], (D_MODEL,), jnp.float32, -bound, bound)
          for i in range(4)]
    params = {"W": Ws, "b": bs}

    query = jax.random.normal(keys[8], (S, B, D_MODEL), jnp.float32)
    key_in = jax.random.normal(keys[9], (S, B, D_MODEL), jnp.float32)
    value = jax.random.normal(keys[10], (S, B, D_MODEL), jnp.float32)

    ref = ref_mha(query, key_in, value, params, h=H, batch_first=False)

    # 1) Exact path (all-f32 MXU inputs, exact softmax division).  Tolerance covers
    #    matmul pass-ordering/precision differences between XLA and Mosaic only.
    out = jax.block_until_ready(
        multi_heads_attention(query, key_in, value, params, h=H,
                              batch_first=False, mxu_dtype=None))
    assert out.shape == (S, B, D_MODEL), out.shape
    assert jnp.allclose(out, ref, atol=1e-2, rtol=1e-2), float(jnp.max(jnp.abs(out - ref)))

    # 2) Perf path (default config): bf16 MXU inputs, f32 accumulation / f32 softmax.
    out_bf16 = jax.block_until_ready(
        multi_heads_attention(query, key_in, value, params, h=H, batch_first=False))
    assert jnp.allclose(out_bf16, ref, atol=5e-2, rtol=5e-2), \
        float(jnp.max(jnp.abs(out_bf16 - ref)))

    # 3) Self-attention fast path (concatenated QKV weights).
    ref_self = ref_mha(query, query, query, params, h=H, batch_first=False)
    out_self = jax.block_until_ready(
        multi_heads_attention(query, query, query, params, h=H,
                              batch_first=False, mxu_dtype=None))
    assert jnp.allclose(out_self, ref_self, atol=1e-2, rtol=1e-2), \
        float(jnp.max(jnp.abs(out_self - ref_self)))

    # 4) batch_first=True layout.
    q_bf = jnp.transpose(query, (1, 0, 2))
    k_bf = jnp.transpose(key_in, (1, 0, 2))
    v_bf = jnp.transpose(value, (1, 0, 2))
    ref_bf = ref_mha(q_bf, k_bf, v_bf, params, h=H, batch_first=True)
    out_bf = jax.block_until_ready(
        multi_heads_attention(q_bf, k_bf, v_bf, params, h=H,
                              batch_first=True, mxu_dtype=None))
    assert jnp.allclose(out_bf, ref_bf, atol=1e-2, rtol=1e-2), \
        float(jnp.max(jnp.abs(out_bf - ref_bf)))

    print("KERNEL_OK")
</pallas_src>

<mosaic_0001>
module attributes {stable_mosaic.version = 11 : i64} {
  func.func @_qkv_proj_kernel(%arg0: i32, %arg1: i32, %arg2: i32, %arg3: memref<16x32xf32, #tpu.memory_space<vmem>>, %arg4: memref<16x32xf32, #tpu.memory_space<vmem>>, %arg5: memref<16x32xf32, #tpu.memory_space<vmem>>, %arg6: memref<32x32xf32, #tpu.memory_space<vmem>>, %arg7: memref<32x32xf32, #tpu.memory_space<vmem>>, %arg8: memref<32x32xf32, #tpu.memory_space<vmem>>, %arg9: memref<1x32xf32, #tpu.memory_space<vmem>>, %arg10: memref<1x32xf32, #tpu.memory_space<vmem>>, %arg11: memref<1x32xf32, #tpu.memory_space<vmem>>, %arg12: memref<16x32xf32, #tpu.memory_space<vmem>>, %arg13: memref<16x32xf32, #tpu.memory_space<vmem>>, %arg14: memref<16x32xf32, #tpu.memory_space<vmem>>, %arg15: memref<16x32xf32, #tpu.memory_space<vmem>>, %arg16: memref<16x32xf32, #tpu.memory_space<vmem>>, %arg17: memref<16x32xf32, #tpu.memory_space<vmem>>) attributes {dimension_semantics = [#tpu.dimension_semantics<parallel>, #tpu.dimension_semantics<parallel>, #tpu.dimension_semantics<arbitrary>], iteration_bounds = array<i64: 1, 1, 1>, scalar_prefetch = 0 : i64, scratch_operands = 3 : i64, tpu.core_type = #tpu.core_type<tc>, window_params = [{transform_indices = @transform_0, window_bounds = array<i64: 16, 32>}, {transform_indices = @transform_1, window_bounds = array<i64: 16, 32>}, {transform_indices = @transform_2, window_bounds = array<i64: 16, 32>}, {transform_indices = @transform_3, window_bounds = array<i64: 32, 32>}, {transform_indices = @transform_4, window_bounds = array<i64: 32, 32>}, {transform_indices = @transform_5, window_bounds = array<i64: 32, 32>}, {transform_indices = @transform_6, window_bounds = array<i64: 1, 32>}, {transform_indices = @transform_7, window_bounds = array<i64: 1, 32>}, {transform_indices = @transform_8, window_bounds = array<i64: 1, 32>}, {transform_indices = @transform_9, window_bounds = array<i64: 16, 32>}, {transform_indices = @transform_10, window_bounds = array<i64: 16, 32>}, {transform_indices = @transform_11, window_bounds = array<i64: 16, 32>}]} {
    %c0_i32 = arith.constant 0 : i32
    %0 = arith.cmpi eq, %arg2, %c0_i32 : i32
    %1 = arith.extui %0 : i1 to i32
    %c0_i32_0 = arith.constant 0 : i32
    %2 = arith.cmpi ne, %1, %c0_i32_0 : i32
    scf.if %2 {
      %cst_28 = arith.constant 0.000000e+00 : f32
      %24 = vector.broadcast %cst_28 : f32 to vector<16x32xf32>
      %c0_29 = arith.constant 0 : index
      %c0_30 = arith.constant 0 : index
      %25 = vector.load %arg15[%c0_29, %c0_30] : memref<16x32xf32, #tpu.memory_space<vmem>>, vector<16x32xf32>
      tpu.vector_store %arg15[%c0_29, %c0_30], %24 {strides = array<i32>} : memref<16x32xf32, #tpu.memory_space<vmem>>, vector<16x32xf32>,
      %cst_31 = arith.constant 0.000000e+00 : f32
      %26 = vector.broadcast %cst_31 : f32 to vector<16x32xf32>
      %c0_32 = arith.constant 0 : index
      %c0_33 = arith.constant 0 : index
      %27 = vector.load %arg16[%c0_32, %c0_33] : memref<16x32xf32, #tpu.memory_space<vmem>>, vector<16x32xf32>
      tpu.vector_store %arg16[%c0_32, %c0_33], %26 {strides = array<i32>} : memref<16x32xf32, #tpu.memory_space<vmem>>, vector<16x32xf32>,
      %cst_34 = arith.constant 0.000000e+00 : f32
      %28 = vector.broadcast %cst_34 : f32 to vector<16x32xf32>
      %c0_35 = arith.constant 0 : index
      %c0_36 = arith.constant 0 : index
      %29 = vector.load %arg17[%c0_35, %c0_36] : memref<16x32xf32, #tpu.memory_space<vmem>>, vector<16x32xf32>
      tpu.vector_store %arg17[%c0_35, %c0_36], %28 {strides = array<i32>} : memref<16x32xf32, #tpu.memory_space<vmem>>, vector<16x32xf32>,
    } else {
    }
    %c0 = arith.constant 0 : index
    %c0_1 = arith.constant 0 : index
    %3 = vector.load %arg15[%c0, %c0_1] : memref<16x32xf32, #tpu.memory_space<vmem>>, vector<16x32xf32>
    %c0_2 = arith.constant 0 : index
    %c0_3 = arith.constant 0 : index
    %4 = vector.load %arg3[%c0_2, %c0_3] : memref<16x32xf32, #tpu.memory_space<vmem>>, vector<16x32xf32>
    %c0_4 = arith.constant 0 : index
    %c0_5 = arith.constant 0 : index
    %5 = vector.load %arg6[%c0_4, %c0_5] : memref<32x32xf32, #tpu.memory_space<vmem>>, vector<32x32xf32>
    %cst = arith.constant dense<0.000000e+00> : vector<16x32xf32>
    %6 = tpu.matmul %4, %5, %cst {dimension_numbers = #tpu.dot_dimension_numbers<[1], [1], [0], [0], [0, 0, 1, 0], [], []>} : vector<16x32xf32>, vector<32x32xf32>, vector<16x32xf32> -> vector<16x32xf32>
    %7 = arith.addf %3, %6 : vector<16x32xf32>
    %c0_6 = arith.constant 0 : index
    %c0_7 = arith.constant 0 : index
    %8 = vector.load %arg15[%c0_6, %c0_7] : memref<16x32xf32, #tpu.memory_space<vmem>>, vector<16x32xf32>
    tpu.vector_store %arg15[%c0_6, %c0_7], %7 {strides = array<i32>} : memref<16x32xf32, #tpu.memory_space<vmem>>, vector<16x32xf32>,
    %c0_8 = arith.constant 0 : index
    %c0_9 = arith.constant 0 : index
    %9 = vector.load %arg16[%c0_8, %c0_9] : memref<16x32xf32, #tpu.memory_space<vmem>>, vector<16x32xf32>
    %c0_10 = arith.constant 0 : index
    %c0_11 = arith.constant 0 : index
    %10 = vector.load %arg4[%c0_10, %c0_11] : memref<16x32xf32, #tpu.memory_space<vmem>>, vector<16x32xf32>
    %c0_12 = arith.constant 0 : index
    %c0_13 = arith.constant 0 : index
    %11 = vector.load %arg7[%c0_12, %c0_13] : memref<32x32xf32, #tpu.memory_space<vmem>>, vector<32x32xf32>
    %cst_14 = arith.constant dense<0.000000e+00> : vector<16x32xf32>
    %12 = tpu.matmul %10, %11, %cst_14 {dimension_numbers = #tpu.dot_dimension_numbers<[1], [1], [0], [0], [0, 0, 1, 0], [], []>} : vector<16x32xf32>, vector<32x32xf32>, vector<16x32xf32> -> vector<16x32xf32>
    %13 = arith.addf %9, %12 : vector<16x32xf32>
    %c0_15 = arith.constant 0 : index
    %c0_16 = arith.constant 0 : index
    %14 = vector.load %arg16[%c0_15, %c0_16] : memref<16x32xf32, #tpu.memory_space<vmem>>, vector<16x32xf32>
    tpu.vector_store %arg16[%c0_15, %c0_16], %13 {strides = array<i32>} : memref<16x32xf32, #tpu.memory_space<vmem>>, vector<16x32xf32>,
    %c0_17 = arith.constant 0 : index
    %c0_18 = arith.constant 0 : index
    %15 = vector.load %arg17[%c0_17, %c0_18] : memref<16x32xf32, #tpu.memory_space<vmem>>, vector<16x32xf32>
    %c0_19 = arith.constant 0 : index
    %c0_20 = arith.constant 0 : index
    %16 = vector.load %arg5[%c0_19, %c0_20] : memref<16x32xf32, #tpu.memory_space<vmem>>, vector<16x32xf32>
    %c0_21 = arith.constant 0 : index
    %c0_22 = arith.constant 0 : index
    %17 = vector.load %arg8[%c0_21, %c0_22] : memref<32x32xf32, #tpu.memory_space<vmem>>, vector<32x32xf32>
    %cst_23 = arith.constant dense<0.000000e+00> : vector<16x32xf32>
    %18 = tpu.matmul %16, %17, %cst_23 {dimension_numbers = #tpu.dot_dimension_numbers<[1], [1], [0], [0], [0, 0, 1, 0], [], []>} : vector<16x32xf32>, vector<32x32xf32>, vector<16x32xf32> -> vector<16x32xf32>
    %19 = arith.addf %15, %18 : vector<16x32xf32>
    %c0_24 = arith.constant 0 : index
    %c0_25 = arith.constant 0 : index
    %20 = vector.load %arg17[%c0_24, %c0_25] : memref<16x32xf32, #tpu.memory_space<vmem>>, vector<16x32xf32>
    tpu.vector_store %arg17[%c0_24, %c0_25], %19 {strides = array<i32>} : memref<16x32xf32, #tpu.memory_space<vmem>>, vector<16x32xf32>,
    %c0_i32_26 = arith.constant 0 : i32
    %21 = arith.cmpi eq, %arg2, %c0_i32_26 : i32
    %22 = arith.extui %21 : i1 to i32
    %c0_i32_27 = arith.constant 0 : i32
    %23 = arith.cmpi ne, %22, %c0_i32_27 : i32
    scf.if %23 {
      %c0_28 = arith.constant 0 : index
      %c0_29 = arith.constant 0 : index
      %24 = vector.load %arg15[%c0_28, %c0_29] : memref<16x32xf32, #tpu.memory_space<vmem>>, vector<16x32xf32>
      %c0_30 = arith.constant 0 : index
      %c0_31 = arith.constant 0 : index
      %25 = vector.load %arg9[%c0_30, %c0_31] : memref<1x32xf32, #tpu.memory_space<vmem>>, vector<1x32xf32>
      %26 = vector.broadcast %25 : vector<1x32xf32> to vector<16x32xf32>
      %27 = arith.addf %24, %26 : vector<16x32xf32>
      %c0_32 = arith.constant 0 : index
      %c0_33 = arith.constant 0 : index
      %28 = vector.load %arg12[%c0_32, %c0_33] : memref<16x32xf32, #tpu.memory_space<vmem>>, vector<16x32xf32>
      tpu.vector_store %arg12[%c0_32, %c0_33], %27 {strides = array<i32>} : memref<16x32xf32, #tpu.memory_space<vmem>>, vector<16x32xf32>,
      %c0_34 = arith.constant 0 : index
      %c0_35 = arith.constant 0 : index
      %29 = vector.load %arg16[%c0_34, %c0_35] : memref<16x32xf32, #tpu.memory_space<vmem>>, vector<16x32xf32>
      %c0_36 = arith.constant 0 : index
      %c0_37 = arith.constant 0 : index
      %30 = vector.load %arg10[%c0_36, %c0_37] : memref<1x32xf32, #tpu.memory_space<vmem>>, vector<1x32xf32>
      %31 = vector.broadcast %30 : vector<1x32xf32> to vector<16x32xf32>
      %32 = arith.addf %29, %31 : vector<16x32xf32>
      %c0_38 = arith.constant 0 : index
      %c0_39 = arith.constant 0 : index
      %33 = vector.load %arg13[%c0_38, %c0_39] : memref<16x32xf32, #tpu.memory_space<vmem>>, vector<16x32xf32>
      tpu.vector_store %arg13[%c0_38, %c0_39], %32 {strides = array<i32>} : memref<16x32xf32, #tpu.memory_space<vmem>>, vector<16x32xf32>,
      %c0_40 = arith.constant 0 : index
      %c0_41 = arith.constant 0 : index
      %34 = vector.load %arg17[%c0_40, %c0_41] : memref<16x32xf32, #tpu.memory_space<vmem>>, vector<16x32xf32>
      %c0_42 = arith.constant 0 : index
      %c0_43 = arith.constant 0 : index
      %35 = vector.load %arg11[%c0_42, %c0_43] : memref<1x32xf32, #tpu.memory_space<vmem>>, vector<1x32xf32>
      %36 = vector.broadcast %35 : vector<1x32xf32> to vector<16x32xf32>
      %37 = arith.addf %34, %36 : vector<16x32xf32>
      %c0_44 = arith.constant 0 : index
      %c0_45 = arith.constant 0 : index
      %38 = vector.load %arg14[%c0_44, %c0_45] : memref<16x32xf32, #tpu.memory_space<vmem>>, vector<16x32xf32>
      tpu.vector_store %arg14[%c0_44, %c0_45], %37 {strides = array<i32>} : memref<16x32xf32, #tpu.memory_space<vmem>>, vector<16x32xf32>,
    } else {
    }
    return
  }
  func.func @transform_0(%arg0: i32, %arg1: i32, %arg2: i32) -> (i32, i32) {
    %c0_i32 = arith.constant 0 : i32
    return %arg0, %arg2 : i32, i32
  }
  func.func @transform_1(%arg0: i32, %arg1: i32, %arg2: i32) -> (i32, i32) {
    %c0_i32 = arith.constant 0 : i32
    return %arg0, %arg2 : i32, i32
  }
  func.func @transform_2(%arg0: i32, %arg1: i32, %arg2: i32) -> (i32, i32) {
    %c0_i32 = arith.constant 0 : i32
    return %arg0, %arg2 : i32, i32
  }
  func.func @transform_3(%arg0: i32, %arg1: i32, %arg2: i32) -> (i32, i32) {
    %c0_i32 = arith.constant 0 : i32
    return %arg1, %arg2 : i32, i32
  }
  func.func @transform_4(%arg0: i32, %arg1: i32, %arg2: i32) -> (i32, i32) {
    %c0_i32 = arith.constant 0 : i32
    return %arg1, %arg2 : i32, i32
  }
  func.func @transform_5(%arg0: i32, %arg1: i32, %arg2: i32) -> (i32, i32) {
    %c0_i32 = arith.constant 0 : i32
    return %arg1, %arg2 : i32, i32
  }
  func.func @transform_6(%arg0: i32, %arg1: i32, %arg2: i32) -> (i32, i32) {
    %c0_i32 = arith.constant 0 : i32
    %c0_i32_0 = arith.constant 0 : i32
    return %c0_i32, %arg1 : i32, i32
  }
  func.func @transform_7(%arg0: i32, %arg1: i32, %arg2: i32) -> (i32, i32) {
    %c0_i32 = arith.constant 0 : i32
    %c0_i32_0 = arith.constant 0 : i32
    return %c0_i32, %arg1 : i32, i32
  }
  func.func @transform_8(%arg0: i32, %arg1: i32, %arg2: i32) -> (i32, i32) {
    %c0_i32 = arith.constant 0 : i32
    %c0_i32_0 = arith.constant 0 : i32
    return %c0_i32, %arg1 : i32, i32
  }
  func.func @transform_9(%arg0: i32, %arg1: i32, %arg2: i32) -> (i32, i32) {
    %c0_i32 = arith.constant 0 : i32
    return %arg0, %arg1 : i32, i32
  }
  func.func @transform_10(%arg0: i32, %arg1: i32, %arg2: i32) -> (i32, i32) {
    %c0_i32 = arith.constant 0 : i32
    return %arg0, %arg1 : i32, i32
  }
  func.func @transform_11(%arg0: i32, %arg1: i32, %arg2: i32) -> (i32, i32) {
    %c0_i32 = arith.constant 0 : i32
    return %arg0, %arg1 : i32, i32
  }
}

</mosaic_0001>

<llo_original>
// kernel: tpu_custom_call.1
$region0: #{tpu_custom_call.1}
  #allocation0 [shape = 'u32[]', space=smem, size = 0x4, offset = 0x4, fixed_abs, tag = 'smem constant byte address 0x4 - core index']
  #allocation1 [shape = 'u32[144,128]{1,0:T(1,128)}', space=vmem, size = 0x12000, scoped, tag = 'internal scratch']
  #allocation2 [shape = 'f32[16,32]{1,0:T(8,128)}', space=vmem, size = 0x2000, scoped, tag = 'scratch operand']
  #allocation3 [shape = 'f32[16,32]{1,0:T(8,128)}', space=vmem, size = 0x2000, scoped, tag = 'scratch operand']
  #allocation4 [shape = 'f32[16,32]{1,0:T(8,128)}', space=vmem, size = 0x2000, scoped, tag = 'scratch operand']
  %s0 = inlined_call_operand.hbm [shape: f32[16,32], index: 0, kind: input, shape index: {}]
  %s1 = inlined_call_operand.hbm [shape: f32[16,32], index: 1, kind: input, shape index: {}]
  %s2 = inlined_call_operand.hbm [shape: f32[16,32], index: 2, kind: input, shape index: {}]
  %s3 = inlined_call_operand.hbm [shape: f32[32,32], index: 3, kind: input, shape index: {}]
  %s4 = inlined_call_operand.hbm [shape: f32[32,32], index: 4, kind: input, shape index: {}]
  %s5 = inlined_call_operand.hbm [shape: f32[32,32], index: 5, kind: input, shape index: {}]
  %s6 = inlined_call_operand.vmem [shape: f32[1,32], index: 6, kind: input, shape index: {}]
  %s7 = inlined_call_operand.vmem [shape: f32[1,32], index: 7, kind: input, shape index: {}]
  %s8 = inlined_call_operand.vmem [shape: f32[1,32], index: 8, kind: input, shape index: {}]
  %s9 = inlined_call_operand.hbm [shape: f32[16,32], index: 9, kind: output, shape index: {0}]
  %s10 = inlined_call_operand.hbm [shape: f32[16,32], index: 10, kind: output, shape index: {1}]
  %s11 = inlined_call_operand.hbm [shape: f32[16,32], index: 11, kind: output, shape index: {2}]
  %12 = xla_tuple %s9, %s10, %s11
  %s13 = sld [smem:[#allocation0]]
  $region94: #{tpu_custom_call.1} parent=0
    _
  %s15 = ssub.s32 1, %s13
  %s16 = scalar_select 0, %s15, %s13
  $region1: #{tpu_custom_call.1} parent=0
    #allocation5 [shape = 'u8[8192]{0}', space=vmem, size = 0x2000, scoped, tag = 'input window, operand 0, single buffered']
    #allocation6 [shape = 's32[1]{0}', space=sflag, size = 0x4, scoped, tag = 'scoped memory for tpu_custom_call.1']
    #allocation7 [shape = 's32[1]{0}', space=sflag, size = 0x4, scoped, tag = 'scoped memory for tpu_custom_call.1']
    #allocation8 [shape = 'u8[8192]{0}', space=vmem, size = 0x2000, scoped, tag = 'input window, operand 1, single buffered']
    #allocation9 [shape = 's32[1]{0}', space=sflag, size = 0x4, scoped, tag = 'scoped memory for tpu_custom_call.1']
    #allocation10 [shape = 'u8[8192]{0}', space=vmem, size = 0x2000, scoped, tag = 'input window, operand 2, single buffered']
    #allocation11 [shape = 'u8[16384]{0}', space=vmem, size = 0x4000, scoped, tag = 'input window, operand 3, single buffered']
    #allocation12 [shape = 's32[1]{0}', space=sflag, size = 0x4, scoped, tag = 'scoped memory for tpu_custom_call.1']
    #allocation13 [shape = 'u8[16384]{0}', space=vmem, size = 0x4000, scoped, tag = 'input window, operand 4, single buffered']
    #allocation14 [shape = 'u8[16384]{0}', space=vmem, size = 0x4000, scoped, tag = 'input window, operand 5, single buffered']
    #allocation15 [shape = 's32[1]{0}', space=sflag, size = 0x4, scoped, tag = 'scoped memory for tpu_custom_call.1']
    #allocation16 [shape = 'u8[8192]{0}', space=vmem, size = 0x2000, scoped, tag = 'output window, operand 0, single buffered']
    #allocation17 [shape = 'u8[8192]{0}', space=vmem, size = 0x2000, scoped, tag = 'output window, operand 1, single buffered']
    #allocation18 [shape = 's32[1]{0}', space=sflag, size = 0x4, scoped, tag = 'scoped memory for tpu_custom_call.1']
    #allocation19 [shape = 'u8[8192]{0}', space=vmem, size = 0x2000, scoped, tag = 'output window, operand 2, single buffered']
    %17 = vsyncpa [#allocation6], 0
    %18 = vsyncpa [#allocation9], 0
    %19 = vsyncpa [#allocation12], 0
    %20 = vsyncpa [#allocation15], 0
    %21 = vsyncpa [#allocation7], 0
    %22 = vsyncpa [#allocation18], 0
    // Predicated region
    $region2: #{tpu_custom_call.1} parent=1 // pred_check
      _
    $region3: #{tpu_custom_call.1} parent=1 // pred_check_branch
      %24 = sbr.rel (0) target = $region5
    $region4: #{tpu_custom_call.1} parent=1 // pred_region
      %s26 = ssub.s32 256, 256
      %27 = vsyncadd [#allocation6], %s26
      %s28 = sshll.u32 [#allocation5], 4
      %s29 = int_to_ptr.vmem [resolvable:$true] %s28
      %34 = dma.hbm_to_vmem [thread:$0]  %s0, 256, %s29, [#allocation6], 128, 128, 8
    $region5: #{tpu_custom_call.1} parent=1 // pred_fallthru
      _
    // Predicated region
    $region6: #{tpu_custom_call.1} parent=1 // pred_check
      _
    $region7: #{tpu_custom_call.1} parent=1 // pred_check_branch
      %36 = sbr.rel (0) target = $region9
    $region8: #{tpu_custom_call.1} parent=1 // pred_region
      %s38 = ssub.s32 256, 256
      %39 = vsyncadd [#allocation9], %s38
      %s40 = sshll.u32 [#allocation8], 4
      %s41 = int_to_ptr.vmem [resolvable:$true] %s40
      %46 = dma.hbm_to_vmem [thread:$0]  %s1, 256, %s41, [#allocation9], 128, 128, 8
    $region9: #{tpu_custom_call.1} parent=1 // pred_fallthru
      _
    // Predicated region
    $region10: #{tpu_custom_call.1} parent=1 // pred_check
      _
    $region11: #{tpu_custom_call.1} parent=1 // pred_check_branch
      %48 = sbr.rel (0) target = $region13
    $region12: #{tpu_custom_call.1} parent=1 // pred_region
      %s50 = ssub.s32 256, 256
      %51 = vsyncadd [#allocation9], %s50
      %s52 = sshll.u32 [#allocation10], 4
      %s53 = int_to_ptr.vmem [resolvable:$true] %s52
      %58 = dma.hbm_to_vmem [thread:$0]  %s2, 256, %s53, [#allocation9], 128, 128, 8
    $region13: #{tpu_custom_call.1} parent=1 // pred_fallthru
      _
    // Predicated region
    $region14: #{tpu_custom_call.1} parent=1 // pred_check
      _
    $region15: #{tpu_custom_call.1} parent=1 // pred_check_branch
      %60 = sbr.rel (0) target = $region17
    $region16: #{tpu_custom_call.1} parent=1 // pred_region
      %s62 = ssub.s32 512, 512
      %63 = vsyncadd [#allocation12], %s62
      %s64 = sshll.u32 [#allocation11], 4
      %s65 = int_to_ptr.vmem [resolvable:$true] %s64
      %70 = dma.hbm_to_vmem [thread:$0]  %s3, 512, %s65, [#allocation12], 128, 128, 8
    $region17: #{tpu_custom_call.1} parent=1 // pred_fallthru
      _
    // Predicated region
    $region18: #{tpu_custom_call.1} parent=1 // pred_check
      _
    $region19: #{tpu_custom_call.1} parent=1 // pred_check_branch
      %72 = sbr.rel (0) target = $region21
    $region20: #{tpu_custom_call.1} parent=1 // pred_region
      %s74 = ssub.s32 512, 512
      %75 = vsyncadd [#allocation12], %s74
      %s76 = sshll.u32 [#allocation13], 4
      %s77 = int_to_ptr.vmem [resolvable:$true] %s76
      %82 = dma.hbm_to_vmem [thread:$0]  %s4, 512, %s77, [#allocation12], 128, 128, 8
    $region21: #{tpu_custom_call.1} parent=1 // pred_fallthru
      _
    // Predicated region
    $region22: #{tpu_custom_call.1} parent=1 // pred_check
      _
    $region23: #{tpu_custom_call.1} parent=1 // pred_check_branch
      %84 = sbr.rel (0) target = $region25
    $region24: #{tpu_custom_call.1} parent=1 // pred_region
      %s86 = ssub.s32 512, 512
      %87 = vsyncadd [#allocation15], %s86
      %s88 = sshll.u32 [#allocation14], 4
      %s89 = int_to_ptr.vmem [resolvable:$true] %s88
      %94 = dma.hbm_to_vmem [thread:$0]  %s5, 512, %s89, [#allocation15], 128, 128, 8
    $region25: #{tpu_custom_call.1} parent=1 // pred_fallthru
      _
    // Predicated region
    $region26: #{tpu_custom_call.1} parent=1 // pred_check
      _
    $region27: #{tpu_custom_call.1} parent=1 // pred_check_branch
      %96 = sbr.rel (0) target = $region29
    $region28: #{tpu_custom_call.1} parent=1 // pred_region
      _
    $region29: #{tpu_custom_call.1} parent=1 // pred_fallthru
      _
    // Predicated region
    $region30: #{tpu_custom_call.1} parent=1 // pred_check
      _
    $region31: #{tpu_custom_call.1} parent=1 // pred_check_branch
      %98 = sbr.rel (0) target = $region33
    $region32: #{tpu_custom_call.1} parent=1 // pred_region
      _
    $region33: #{tpu_custom_call.1} parent=1 // pred_fallthru
      _
    // Predicated region
    $region34: #{tpu_custom_call.1} parent=1 // pred_check
      _
    $region35: #{tpu_custom_call.1} parent=1 // pred_check_branch
      %100 = sbr.rel (0) target = $region37
    $region36: #{tpu_custom_call.1} parent=1 // pred_region
      _
    $region37: #{tpu_custom_call.1} parent=1 // pred_fallthru
      _
    // Predicated region
    $region38: #{tpu_custom_call.1} parent=1 // pred_check
      _
    $region39: #{tpu_custom_call.1} parent=1 // pred_check_branch
      %102 = sbr.rel (0) target = $region41
    $region40: #{tpu_custom_call.1} parent=1 // pred_region
      %103 = dma.done [#allocation6], 256
    $region41: #{tpu_custom_call.1} parent=1 // pred_fallthru
      _
    // Predicated region
    $region42: #{tpu_custom_call.1} parent=1 // pred_check
      _
    $region43: #{tpu_custom_call.1} parent=1 // pred_check_branch
      %105 = sbr.rel (0) target = $region45
    $region44: #{tpu_custom_call.1} parent=1 // pred_region
      %106 = dma.done [#allocation9], 256
    $region45: #{tpu_custom_call.1} parent=1 // pred_fallthru
      _
    // Predicated region
    $region46: #{tpu_custom_call.1} parent=1 // pred_check
      _
    $region47: #{tpu_custom_call.1} parent=1 // pred_check_branch
      %108 = sbr.rel (0) target = $region49
    $region48: #{tpu_custom_call.1} parent=1 // pred_region
      %109 = dma.done [#allocation9], 256
    $region49: #{tpu_custom_call.1} parent=1 // pred_fallthru
      _
    // Predicated region
    $region50: #{tpu_custom_call.1} parent=1 // pred_check
      _
    $region51: #{tpu_custom_call.1} parent=1 // pred_check_branch
      %111 = sbr.rel (0) target = $region53
    $region52: #{tpu_custom_call.1} parent=1 // pred_region
      %112 = dma.done [#allocation12], 512
    $region53: #{tpu_custom_call.1} parent=1 // pred_fallthru
      _
    // Predicated region
    $region54: #{tpu_custom_call.1} parent=1 // pred_check
      _
    $region55: #{tpu_custom_call.1} parent=1 // pred_check_branch
      %114 = sbr.rel (0) target = $region57
    $region56: #{tpu_custom_call.1} parent=1 // pred_region
      %115 = dma.done [#allocation12], 512
    $region57: #{tpu_custom_call.1} parent=1 // pred_fallthru
      _
    // Predicated region
    $region58: #{tpu_custom_call.1} parent=1 // pred_check
      _
    $region59: #{tpu_custom_call.1} parent=1 // pred_check_branch
      %117 = sbr.rel (0) target = $region61
    $region60: #{tpu_custom_call.1} parent=1 // pred_region
      %118 = dma.done [#allocation15], 512
    $region61: #{tpu_custom_call.1} parent=1 // pred_fallthru
      _
    %p119 = scmp.eq.s32.totalorder 0, 0
    // Predicated region
    $region62: #{tpu_custom_call.1} parent=1 // pred_check
      %p120 = pneg %p119
    $region63: #{tpu_custom_call.1} parent=1 // pred_check_branch
      %122 = sbr.rel (%p120) target = $region65
    $region64: #{tpu_custom_call.1} parent=1 // pred_region
      %vm123 = vcmask 261120
      %124 = vst.msk [vmem:[#allocation2] sm:$0xff] %vm123, 0.0
      %125 = vst.msk [vmem:[#allocation2 + $0x8] sm:$0xff] %vm123, 0.0
      %126 = vst.msk [vmem:[#allocation3] sm:$0xff] %vm123, 0.0
      %127 = vst.msk [vmem:[#allocation3 + $0x8] sm:$0xff] %vm123, 0.0
      %128 = vst.msk [vmem:[#allocation4] sm:$0xff] %vm123, 0.0
      %129 = vst.msk [vmem:[#allocation4 + $0x8] sm:$0xff] %vm123, 0.0
    $region65: #{tpu_custom_call.1} parent=1 // pred_fallthru
      _
    %v130 = vld [vmem:[#allocation2] sm:$0xff]
    %v131 = vld [vmem:[#allocation2 + $0x8] sm:$0xff]
    %v132 = vld [vmem:[#allocation5] sm:$0xff]
    %v133 = vld [vmem:[#allocation5 + $0x8] sm:$0xff]
    %v134 = vld [vmem:[#allocation11] sm:$0xff]
    %v135 = vld [vmem:[#allocation11 + $0x8] sm:$0xff]
    %v136 = vld [vmem:[#allocation11 + $0x10] sm:$0xff]
    %v137 = vld [vmem:[#allocation11 + $0x18] sm:$0xff]
    %vm138 = vcmask 261120
    %v140 = vsel %vm138, %v132, 0
    %v143 = vsel %vm138, %v133, 0
    %v146 = vsel %vm138, %v134, 0
    %v149 = vsel %vm138, %v135, 0
    %v152 = vsel %vm138, %v136, 0
    %v155 = vsel %vm138, %v137, 0
    %157 = vmatprep.subr.mxu0 0.0
    %158 = vmatpush1.xpose.msra.mxu0 %v146
    %159 = vmatprep.subr.mxu0 0.0
    %160 = vmatpush1.xpose.msra.mxu0 %v149
    %161 = vmatprep.subr.mxu0 0.0
    %162 = vmatpush1.xpose.msra.mxu0 %v152
    %163 = vmatprep.subr.mxu0 0.0
    %164 = vmatpush1.xpose.msra.mxu0 %v155
    %165 = vmatprep.subr.mxu0 0.0
    %166 = vmatpush1.xpose.msra.mxu0 0.0
    %167 = vmatprep.subr.mxu0 0.0
    %168 = vmatpush1.xpose.msra.mxu0 0.0
    %169 = vmatprep.subr.mxu0 0.0
    %170 = vmatpush1.xpose.msra.mxu0 0.0
    %171 = vmatprep.subr.mxu0 0.0
    %172 = vmatpush1.xpose.msra.mxu0 0.0
    %173 = vmatprep.subr.mxu0 0.0
    %174 = vmatpush1.xpose.msra.mxu0 0.0
    %175 = vmatprep.subr.mxu0 0.0
    %176 = vmatpush1.xpose.msra.mxu0 0.0
    %177 = vmatprep.subr.mxu0 0.0
    %178 = vmatpush1.xpose.msra.mxu0 0.0
    %179 = vmatprep.subr.mxu0 0.0
    %180 = vmatpush1.xpose.msra.mxu0 0.0
    %181 = vmatprep.subr.mxu0 0.0
    %182 = vmatpush1.xpose.msra.mxu0 0.0
    %183 = vmatprep.subr.mxu0 0.0
    %184 = vmatpush1.xpose.msra.mxu0 0.0
    %185 = vmatprep.subr.mxu0 0.0
    %186 = vmatpush1.xpose.msra.mxu0 0.0
    %187 = vmatprep.subr.mxu0 0.0
    %188 = vmatpush1.xpose.msra.mxu0 0.0
    %189 = vmatprep.subr.mxu0 0.0
    %190 = vmatpush1.xpose.msra.mxu0 0.0
    %191 = vmatprep.subr.mxu0 0.0
    %192 = vmatpush1.xpose.msra.mxu0 0.0
    %193 = vmatprep.subr.mxu0 0.0
    %194 = vmatpush1.xpose.msra.mxu0 0.0
    %195 = vmatprep.subr.mxu0 0.0
    %196 = vmatpush1.xpose.msra.mxu0 0.0
    %197 = vmatprep.subr.mxu0 0.0
    %198 = vmatpush1.xpose.msra.mxu0 0.0
    %199 = vmatprep.subr.mxu0 0.0
    %200 = vmatpush1.xpose.msra.mxu0 0.0
    %201 = vmatprep.subr.mxu0 0.0
    %202 = vmatpush1.xpose.msra.mxu0 0.0
    %203 = vmatprep.subr.mxu0 0.0
    %204 = vmatpush1.xpose.msra.mxu0 0.0
    %205 = vmatprep.subr.mxu0 0.0
    %206 = vmatpush1.xpose.msra.mxu0 0.0
    %207 = vmatprep.subr.mxu0 0.0
    %208 = vmatpush1.xpose.msra.mxu0 0.0
    %209 = vmatprep.subr.mxu0 0.0
    %210 = vmatpush1.xpose.msra.mxu0 0.0
    %211 = vmatprep.subr.mxu0 0.0
    %212 = vmatpush1.xpose.msra.mxu0 0.0
    %213 = vmatprep.subr.mxu0 0.0
    %214 = vmatpush1.xpose.msra.mxu0 0.0
    %215 = vmatprep.subr.mxu0 0.0
    %216 = vmatpush1.xpose.msra.mxu0 0.0
    %217 = vmatprep.subr.mxu0 0.0
    %218 = vmatpush1.xpose.msra.mxu0 0.0
    %219 = vmatprep.subr.mxu0 0.0
    %220 = vmatpush1.xpose.msra.mxu0 0.0
    %221 = vmatprep.mubr.f32.mxu0 0.0
    %222 = vmatmul.mubr.f32.gmra.mrb[0].mxu0 %v140
    %v223 = vpop.f32.mrb[0].mxu0
    %v224 = vadd.f32 0.0, %v223
    %v225 = vpop.f32.mrb[0].mxu0
    %226 = vmatprep.mubr.f32.mxu0 0.0
    %227 = vmatmul.mubr.f32.gmra.mrb[0].mxu0 %v143
    %v228 = vpop.f32.mrb[0].mxu0
    %v229 = vadd.f32 0.0, %v228
    %v230 = vpop.f32.mrb[0].mxu0
    %231 = vdwg.mxu0
    %v232 = vadd.f32 %v130, %v224
    %v233 = vadd.f32 %v131, %v229
    %234 = vst.msk [vmem:[#allocation2] sm:$0xff] %vm138, %v232
    %235 = vst.msk [vmem:[#allocation2 + $0x8] sm:$0xff] %vm138, %v233
    %v236 = vld [vmem:[#allocation3] sm:$0xff]
    %v237 = vld [vmem:[#allocation3 + $0x8] sm:$0xff]
    %v238 = vld [vmem:[#allocation8] sm:$0xff]
    %v239 = vld [vmem:[#allocation8 + $0x8] sm:$0xff]
    %v240 = vld [vmem:[#allocation13] sm:$0xff]
    %v241 = vld [vmem:[#allocation13 + $0x8] sm:$0xff]
    %v242 = vld [vmem:[#allocation13 + $0x10] sm:$0xff]
    %v243 = vld [vmem:[#allocation13 + $0x18] sm:$0xff]
    %v245 = vsel %vm138, %v238, 0
    %v248 = vsel %vm138, %v239, 0
    %v251 = vsel %vm138, %v240, 0
    %v254 = vsel %vm138, %v241, 0
    %v257 = vsel %vm138, %v242, 0
    %v260 = vsel %vm138, %v243, 0
    %262 = vmatprep.subr.mxu0 0.0
    %263 = vmatpush1.xpose.msra.mxu0 %v251
    %264 = vmatprep.subr.mxu0 0.0
    %265 = vmatpush1.xpose.msra.mxu0 %v254
    %266 = vmatprep.subr.mxu0 0.0
    %267 = vmatpush1.xpose.msra.mxu0 %v257
    %268 = vmatprep.subr.mxu0 0.0
    %269 = vmatpush1.xpose.msra.mxu0 %v260
    %270 = vmatprep.subr.mxu0 0.0
    %271 = vmatpush1.xpose.msra.mxu0 0.0
    %272 = vmatprep.subr.mxu0 0.0
    %273 = vmatpush1.xpose.msra.mxu0 0.0
    %274 = vmatprep.subr.mxu0 0.0
    %275 = vmatpush1.xpose.msra.mxu0 0.0
    %276 = vmatprep.subr.mxu0 0.0
    %277 = vmatpush1.xpose.msra.mxu0 0.0
    %278 = vmatprep.subr.mxu0 0.0
    %279 = vmatpush1.xpose.msra.mxu0 0.0
    %280 = vmatprep.subr.mxu0 0.0
    %281 = vmatpush1.xpose.msra.mxu0 0.0
    %282 = vmatprep.subr.mxu0 0.0
    %283 = vmatpush1.xpose.msra.mxu0 0.0
    %284 = vmatprep.subr.mxu0 0.0
    %285 = vmatpush1.xpose.msra.mxu0 0.0
    %286 = vmatprep.subr.mxu0 0.0
    %287 = vmatpush1.xpose.msra.mxu0 0.0
    %288 = vmatprep.subr.mxu0 0.0
    %289 = vmatpush1.xpose.msra.mxu0 0.0
    %290 = vmatprep.subr.mxu0 0.0
    %291 = vmatpush1.xpose.msra.mxu0 0.0
    %292 = vmatprep.subr.mxu0 0.0
    %293 = vmatpush1.xpose.msra.mxu0 0.0
    %294 = vmatprep.subr.mxu0 0.0
    %295 = vmatpush1.xpose.msra.mxu0 0.0
    %296 = vmatprep.subr.mxu0 0.0
    %297 = vmatpush1.xpose.msra.mxu0 0.0
    %298 = vmatprep.subr.mxu0 0.0
    %299 = vmatpush1.xpose.msra.mxu0 0.0
    %300 = vmatprep.subr.mxu0 0.0
    %301 = vmatpush1.xpose.msra.mxu0 0.0
    %302 = vmatprep.subr.mxu0 0.0
    %303 = vmatpush1.xpose.msra.mxu0 0.0
    %304 = vmatprep.subr.mxu0 0.0
    %305 = vmatpush1.xpose.msra.mxu0 0.0
    %306 = vmatprep.subr.mxu0 0.0
    %307 = vmatpush1.xpose.msra.mxu0 0.0
    %308 = vmatprep.subr.mxu0 0.0
    %309 = vmatpush1.xpose.msra.mxu0 0.0
    %310 = vmatprep.subr.mxu0 0.0
    %311 = vmatpush1.xpose.msra.mxu0 0.0
    %312 = vmatprep.subr.mxu0 0.0
    %313 = vmatpush1.xpose.msra.mxu0 0.0
    %314 = vmatprep.subr.mxu0 0.0
    %315 = vmatpush1.xpose.msra.mxu0 0.0
    %316 = vmatprep.subr.mxu0 0.0
    %317 = vmatpush1.xpose.msra.mxu0 0.0
    %318 = vmatprep.subr.mxu0 0.0
    %319 = vmatpush1.xpose.msra.mxu0 0.0
    %320 = vmatprep.subr.mxu0 0.0
    %321 = vmatpush1.xpose.msra.mxu0 0.0
    %322 = vmatprep.subr.mxu0 0.0
    %323 = vmatpush1.xpose.msra.mxu0 0.0
    %324 = vmatprep.subr.mxu0 0.0
    %325 = vmatpush1.xpose.msra.mxu0 0.0
    %326 = vmatprep.mubr.f32.mxu0 0.0
    %327 = vmatmul.mubr.f32.gmra.mrb[0].mxu0 %v245
    %v328 = vpop.f32.mrb[0].mxu0
    %v329 = vadd.f32 0.0, %v328
    %v330 = vpop.f32.mrb[0].mxu0
    %331 = vmatprep.mubr.f32.mxu0 0.0
    %332 = vmatmul.mubr.f32.gmra.mrb[0].mxu0 %v248
    %v333 = vpop.f32.mrb[0].mxu0
    %v334 = vadd.f32 0.0, %v333
    %v335 = vpop.f32.mrb[0].mxu0
    %336 = vdwg.mxu0
    %v337 = vadd.f32 %v236, %v329
    %v338 = vadd.f32 %v237, %v334
    %339 = vst.msk [vmem:[#allocation3] sm:$0xff] %vm138, %v337
    %340 = vst.msk [vmem:[#allocation3 + $0x8] sm:$0xff] %vm138, %v338
    %v341 = vld [vmem:[#allocation4] sm:$0xff]
    %v342 = vld [vmem:[#allocation4 + $0x8] sm:$0xff]
    %v343 = vld [vmem:[#allocation10] sm:$0xff]
    %v344 = vld [vmem:[#allocation10 + $0x8] sm:$0xff]
    %v345 = vld [vmem:[#allocation14] sm:$0xff]
    %v346 = vld [vmem:[#allocation14 + $0x8] sm:$0xff]
    %v347 = vld [vmem:[#allocation14 + $0x10] sm:$0xff]
    %v348 = vld [vmem:[#allocation14 + $0x18] sm:$0xff]
    %v350 = vsel %vm138, %v343, 0
    %v353 = vsel %vm138, %v344, 0
    %v356 = vsel %vm138, %v345, 0
    %v359 = vsel %vm138, %v346, 0
    %v362 = vsel %vm138, %v347, 0
    %v365 = vsel %vm138, %v348, 0
    %367 = vmatprep.subr.mxu0 0.0
    %368 = vmatpush1.xpose.msra.mxu0 %v356
    %369 = vmatprep.subr.mxu0 0.0
    %370 = vmatpush1.xpose.msra.mxu0 %v359
    %371 = vmatprep.subr.mxu0 0.0
    %372 = vmatpush1.xpose.msra.mxu0 %v362
    %373 = vmatprep.subr.mxu0 0.0
    %374 = vmatpush1.xpose.msra.mxu0 %v365
    %375 = vmatprep.subr.mxu0 0.0
    %376 = vmatpush1.xpose.msra.mxu0 0.0
    %377 = vmatprep.subr.mxu0 0.0
    %378 = vmatpush1.xpose.msra.mxu0 0.0
    %379 = vmatprep.subr.mxu0 0.0
    %380 = vmatpush1.xpose.msra.mxu0 0.0
    %381 = vmatprep.subr.mxu0 0.0
    %382 = vmatpush1.xpose.msra.mxu0 0.0
    %383 = vmatprep.subr.mxu0 0.0
    %384 = vmatpush1.xpose.msra.mxu0 0.0
    %385 = vmatprep.subr.mxu0 0.0
    %386 = vmatpush1.xpose.msra.mxu0 0.0
    %387 = vmatprep.subr.mxu0 0.0
    %388 = vmatpush1.xpose.msra.mxu0 0.0
    %389 = vmatprep.subr.mxu0 0.0
    %390 = vmatpush1.xpose.msra.mxu0 0.0
    %391 = vmatprep.subr.mxu0 0.0
    %392 = vmatpush1.xpose.msra.mxu0 0.0
    %393 = vmatprep.subr.mxu0 0.0
    %394 = vmatpush1.xpose.msra.mxu0 0.0
    %395 = vmatprep.subr.mxu0 0.0
    %396 = vmatpush1.xpose.msra.mxu0 0.0
    %397 = vmatprep.subr.mxu0 0.0
    %398 = vmatpush1.xpose.msra.mxu0 0.0
    %399 = vmatprep.subr.mxu0 0.0
    %400 = vmatpush1.xpose.msra.mxu0 0.0
    %401 = vmatprep.subr.mxu0 0.0
    %402 = vmatpush1.xpose.msra.mxu0 0.0
    %403 = vmatprep.subr.mxu0 0.0
    %404 = vmatpush1.xpose.msra.mxu0 0.0
    %405 = vmatprep.subr.mxu0 0.0
    %406 = vmatpush1.xpose.msra.mxu0 0.0
    %407 = vmatprep.subr.mxu0 0.0
    %408 = vmatpush1.xpose.msra.mxu0 0.0
    %409 = vmatprep.subr.mxu0 0.0
    %410 = vmatpush1.xpose.msra.mxu0 0.0
    %411 = vmatprep.subr.mxu0 0.0
    %412 = vmatpush1.xpose.msra.mxu0 0.0
    %413 = vmatprep.subr.mxu0 0.0
    %414 = vmatpush1.xpose.msra.mxu0 0.0
    %415 = vmatprep.subr.mxu0 0.0
    %416 = vmatpush1.xpose.msra.mxu0 0.0
    %417 = vmatprep.subr.mxu0 0.0
    %418 = vmatpush1.xpose.msra.mxu0 0.0
    %419 = vmatprep.subr.mxu0 0.0
    %420 = vmatpush1.xpose.msra.mxu0 0.0
    %421 = vmatprep.subr.mxu0 0.0
    %422 = vmatpush1.xpose.msra.mxu0 0.0
    %423 = vmatprep.subr.mxu0 0.0
    %424 = vmatpush1.xpose.msra.mxu0 0.0
    %425 = vmatprep.subr.mxu0 0.0
    %426 = vmatpush1.xpose.msra.mxu0 0.0
    %427 = vmatprep.subr.mxu0 0.0
    %428 = vmatpush1.xpose.msra.mxu0 0.0
    %429 = vmatprep.subr.mxu0 0.0
    %430 = vmatpush1.xpose.msra.mxu0 0.0
    %431 = vmatprep.mubr.f32.mxu0 0.0
    %432 = vmatmul.mubr.f32.gmra.mrb[0].mxu0 %v350
    %v433 = vpop.f32.mrb[0].mxu0
    %v434 = vadd.f32 0.0, %v433
    %v435 = vpop.f32.mrb[0].mxu0
    %436 = vmatprep.mubr.f32.mxu0 0.0
    %437 = vmatmul.mubr.f32.gmra.mrb[0].mxu0 %v353
    %v438 = vpop.f32.mrb[0].mxu0
    %v439 = vadd.f32 0.0, %v438
    %v440 = vpop.f32.mrb[0].mxu0
    %441 = vdwg.mxu0
    %v442 = vadd.f32 %v341, %v434
    %v443 = vadd.f32 %v342, %v439
    %444 = vst.msk [vmem:[#allocation4] sm:$0xff] %vm138, %v442
    %445 = vst.msk [vmem:[#allocation4 + $0x8] sm:$0xff] %vm138, %v443
    // Predicated region
    $region66: #{tpu_custom_call.1} parent=1 // pred_check
      %p446 = pneg %p119
    $region67: #{tpu_custom_call.1} parent=1 // pred_check_branch
      %448 = sbr.rel (%p446) target = $region69
    $region68: #{tpu_custom_call.1} parent=1 // pred_region
      %v449 = vld [vmem:[#allocation2] sm:$0xff]
      %v450 = vld [vmem:[#allocation2 + $0x8] sm:$0xff]
      %v451 = vld [vmem:[%s6] sm:$0x1]
      %v453 = vlaneseq
      %v454 = vshrl.u32 %v453, 7
      %v455 = vsub.s32 0, %v454
      %v456 = vrot.slane %v451, %v455
      %v458 = vadd.f32 %v449, %v456
      %v459 = vadd.f32 %v450, %v456
      %460 = vst.msk [vmem:[#allocation16] sm:$0xff] %vm138, %v458
      %461 = vst.msk [vmem:[#allocation16 + $0x8] sm:$0xff] %vm138, %v459
      %v462 = vld [vmem:[#allocation3] sm:$0xff]
      %v463 = vld [vmem:[#allocation3 + $0x8] sm:$0xff]
      %v464 = vld [vmem:[%s7] sm:$0x1]
      %v466 = vlaneseq
      %v467 = vshrl.u32 %v466, 7
      %v468 = vsub.s32 0, %v467
      %v469 = vrot.slane %v464, %v468
      %v471 = vadd.f32 %v462, %v469
      %v472 = vadd.f32 %v463, %v469
      %473 = vst.msk [vmem:[#allocation17] sm:$0xff] %vm138, %v471
      %474 = vst.msk [vmem:[#allocation17 + $0x8] sm:$0xff] %vm138, %v472
      %v475 = vld [vmem:[#allocation4] sm:$0xff]
      %v476 = vld [vmem:[#allocation4 + $0x8] sm:$0xff]
      %v477 = vld [vmem:[%s8] sm:$0x1]
      %v479 = vlaneseq
      %v480 = vshrl.u32 %v479, 7
      %v481 = vsub.s32 0, %v480
      %v482 = vrot.slane %v477, %v481
      %v484 = vadd.f32 %v475, %v482
      %v485 = vadd.f32 %v476, %v482
      %486 = vst.msk [vmem:[#allocation19] sm:$0xff] %vm138, %v484
      %487 = vst.msk [vmem:[#allocation19 + $0x8] sm:$0xff] %vm138, %v485
    $region69: #{tpu_custom_call.1} parent=1 // pred_fallthru
      _
    // Predicated region
    $region70: #{tpu_custom_call.1} parent=1 // pred_check
      _
    $region71: #{tpu_custom_call.1} parent=1 // pred_check_branch
      %489 = sbr.rel (0) target = $region73
    $region72: #{tpu_custom_call.1} parent=1 // pred_region
      %s491 = ssub.s32 256, 256
      %492 = vsyncadd [#allocation7], %s491
      %s493 = sshll.u32 [#allocation16], 4
      %s494 = int_to_ptr.vmem [resolvable:$true] %s493
      %499 = dma.vmem_to_hbm [thread:$0]  %s494, 256, %s9, [#allocation7], 128, 128, 8
    $region73: #{tpu_custom_call.1} parent=1 // pred_fallthru
      _
    // Predicated region
    $region74: #{tpu_custom_call.1} parent=1 // pred_check
      _
    $region75: #{tpu_custom_call.1} parent=1 // pred_check_branch
      %501 = sbr.rel (0) target = $region77
    $region76: #{tpu_custom_call.1} parent=1 // pred_region
      %s503 = ssub.s32 256, 256
      %504 = vsyncadd [#allocation18], %s503
      %s505 = sshll.u32 [#allocation17], 4
      %s506 = int_to_ptr.vmem [resolvable:$true] %s505
      %511 = dma.vmem_to_hbm [thread:$0]  %s506, 256, %s10, [#allocation18], 128, 128, 8
    $region77: #{tpu_custom_call.1} parent=1 // pred_fallthru
      _
    // Predicated region
    $region78: #{tpu_custom_call.1} parent=1 // pred_check
      _
    $region79: #{tpu_custom_call.1} parent=1 // pred_check_branch
      %513 = sbr.rel (0) target = $region81
    $region80: #{tpu_custom_call.1} parent=1 // pred_region
      %s515 = ssub.s32 256, 256
      %516 = vsyncadd [#allocation18], %s515
      %s517 = sshll.u32 [#allocation19], 4
      %s518 = int_to_ptr.vmem [resolvable:$true] %s517
      %523 = dma.vmem_to_hbm [thread:$0]  %s518, 256, %s11, [#allocation18], 128, 128, 8
    $region81: #{tpu_custom_call.1} parent=1 // pred_fallthru
      _
    // Predicated region
    $region82: #{tpu_custom_call.1} parent=1 // pred_check
      _
    $region83: #{tpu_custom_call.1} parent=1 // pred_check_branch
      %525 = sbr.rel (0) target = $region85
    $region84: #{tpu_custom_call.1} parent=1 // pred_region
      %526 = dma.done [#allocation7], 256
    $region85: #{tpu_custom_call.1} parent=1 // pred_fallthru
      _
    // Predicated region
    $region86: #{tpu_custom_call.1} parent=1 // pred_check
      _
    $region87: #{tpu_custom_call.1} parent=1 // pred_check_branch
      %528 = sbr.rel (0) target = $region89
    $region88: #{tpu_custom_call.1} parent=1 // pred_region
      %529 = dma.done [#allocation18], 256
    $region89: #{tpu_custom_call.1} parent=1 // pred_fallthru
      _
    // Predicated region
    $region90: #{tpu_custom_call.1} parent=1 // pred_check
      _
    $region91: #{tpu_custom_call.1} parent=1 // pred_check_branch
      %531 = sbr.rel (0) target = $region93
    $region92: #{tpu_custom_call.1} parent=1 // pred_region
      %532 = dma.done [#allocation18], 256
    $region93: #{tpu_custom_call.1} parent=1 // pred_fallthru
      _
    %533 = vsyncpa [#allocation6], 1
    %534 = vsyncpa [#allocation9], 1
    %535 = vsyncpa [#allocation12], 1
    %536 = vsyncpa [#allocation15], 1
    %537 = vsyncpa [#allocation7], 1
    %538 = vsyncpa [#allocation18], 1

</llo_original>
